<compile_context>
chip_gen: v5e
topology: v5e:2x2
jax: 0.10.0
libtpu: 0.0.40
codegen_flags: <defaults>
</compile_context>

<pallas_src>
import functools

import jax
import jax.numpy as jnp
import numpy as np
from jax import lax
from jax.experimental import pallas as pl
from jax.experimental.pallas import tpu as pltpu

_PI = 3.14159265358979323846
_PI_2 = _PI / 2.0
_PI_4 = _PI / 4.0
_TAN_3PI_8 = 2.414213562373095
_TAN_PI_8 = 0.4142135623730951

_LANE = 128      # batch lanes per sublane-row
_CHUNK = 8       # sublane rows per inner-loop step (one full vreg per value)
_MAX_TILE = 512  # max sublane rows per grid step


def _cdiv(a, b):
    return -(-a // b)


def _round_up(a, b):
    return _cdiv(a, b) * b


def _basis_layout(basis):
    """Static description of which parameter groups a basis needs."""
    if basis not in ('T', 'SO', 'SE', 'D', 'CSO', 'GL+', 'Aff+'):
        raise ValueError(f'Unknown basis {basis}')
    need_t = basis in ('T', 'SE', 'D', 'CSO', 'Aff+')
    need_r = basis in ('SO', 'SE', 'CSO', 'GL+', 'Aff+')
    need_z = basis in ('D', 'CSO', 'GL+', 'Aff+')
    zmean = basis in ('D', 'CSO')          # store mean(Z) instead of Z
    need_s = basis in ('GL+', 'Aff+')
    n_out = 3 * need_t + 3 * need_r + need_z * (1 if zmean else 3) + 3 * need_s
    return need_t, need_r, need_z, zmean, need_s, n_out


# ---------------------------------------------------------------------------
# Fused atan2: one divide per call.  Cephes-style minimax polynomial
# (float32 accuracy ~1e-7); range classification done on |y| vs k*|x| so the
# y/x pre-divide of the classic formulation is not needed.
# ---------------------------------------------------------------------------
def _atan2(y, x):
    ay = jnp.abs(y)
    ax = jnp.abs(x)
    big = ay > _TAN_3PI_8 * ax
    mid = ay > _TAN_PI_8 * ax
    num = jnp.where(big, -ax, jnp.where(mid, ay - ax, ay))
    den = jnp.where(big, ay, jnp.where(mid, ay + ax, ax))
    den = jnp.where(den == 0.0, 1.0, den)          # y == x == 0 -> 0
    z = num / den
    y0 = jnp.where(big, _PI_2, jnp.where(mid, _PI_4, 0.0))
    w = z * z
    p = ((8.05374449538e-2 * w - 1.38776856032e-1) * w
         + 1.99777106478e-1) * w - 3.33329491539e-1
    a = y0 + (p * w * z + z)                       # atan(|y|/|x|) in [0, pi/2]
    a = jnp.where(x >= 0.0, a, _PI - a)            # quadrant
    return jnp.where(y >= 0.0, a, -a)


# ---------------------------------------------------------------------------
# Pallas kernel: classic (T, R, Z, S) decomposition of a batch of affines.
# Input block  : (12, TILE_S, 128) -- row r holds flattened entry (r//4, r%4)
#                of the top 3x4 of the affine, dense over 128 batch lanes.
# Output block : (n_out, TILE_S, 128) -- basis-dependent row layout.
# Work is done in (8, 128) chunks (one vreg per live value) via pl.loop to
# keep vector-register pressure well under 64.
# NOTE: unroll=2 on the chunk loop was considered (two independent chains to
# hide EUP latency) but left off: live set ~30 vregs/chunk would be ~60 when
# doubled, right at the spill boundary.
# ---------------------------------------------------------------------------
def _affine_classic_inverse_kernel(x_ref, o_ref, *, num_chunks, basis,
                                   logzooms):
    need_t, need_r, need_z, zmean, need_s, _ = _basis_layout(basis)
    need_chol = need_r or need_z or need_s
    t_row = 0
    r_row = t_row + 3 * need_t
    z_row = r_row + 3 * need_r
    s_row = z_row + need_z * (1 if zmean else 3)

    @pl.loop(0, num_chunks)
    def _(ci):
        off = pl.multiple_of(ci * _CHUNK, _CHUNK)
        sl = pl.ds(off, _CHUNK)

        def row(r):
            return x_ref[r, sl, :]              # (CHUNK, 128) dense vreg

        # Translations: load and store immediately (short live range).
        if need_t:
            o_ref[t_row + 0, sl, :] = row(3)
            o_ref[t_row + 1, sl, :] = row(7)
            o_ref[t_row + 2, sl, :] = row(11)

        if not need_chol:                       # basis == 'T'
            return

        m00, m01, m02 = row(0), row(1), row(2)
        m10, m11, m12 = row(4), row(5), row(6)
        m20, m21, m22 = row(8), row(9), row(10)

        # Gram matrix MM = M^T M (upper triangle only).
        mm00 = m00 * m00 + m10 * m10 + m20 * m20
        mm01 = m00 * m01 + m10 * m11 + m20 * m21
        mm02 = m00 * m02 + m10 * m12 + m20 * m22
        mm11 = m01 * m01 + m11 * m11 + m21 * m21
        mm12 = m01 * m02 + m11 * m12 + m21 * m22
        mm22 = m02 * m02 + m12 * m12 + m22 * m22

        # Upper Cholesky C^T C = MM, via rsqrt pivots (no divides):
        #   c = d * rsqrt(d), inv_c = rsqrt(d).
        r0 = lax.rsqrt(mm00)
        c00 = mm00 * r0
        inv_c00 = r0
        inv_mm00 = r0 * r0
        s0 = mm01 * inv_mm00                    # shear xy  (= c01/c00)
        s1 = mm02 * inv_mm00                    # shear xz  (= c02/c00)
        d11 = jnp.maximum(mm11 - mm01 * mm01 * inv_mm00, 0.0)
        r1 = lax.rsqrt(d11)
        c11 = d11 * r1
        inv_c11 = r1
        c12 = (mm12 - mm01 * mm02 * inv_mm00) * inv_c11
        s2 = c12 * inv_c11                      # shear yz  (= c12/c11)
        d22 = jnp.maximum(mm22 - mm02 * mm02 * inv_mm00 - c12 * c12, 0.0)
        r2 = lax.rsqrt(d22)
        c22 = d22 * r2
        inv_c22 = r2

        # det(M) sign (SPM flips the first zoom when det < 0).
        det = (m00 * (m11 * m22 - m12 * m21)
               - m01 * (m10 * m22 - m12 * m20)
               + m02 * (m10 * m21 - m11 * m20))
        neg = det < 0.0

        if need_z:
            z0 = jnp.where(neg, -c00, c00)
            if zmean:
                if logzooms:
                    # mean(log Z) = log(z0*z1*z2)/3 (NaN when det<0, as torch).
                    zm = jnp.log(z0 * c11 * c22) * (1.0 / 3.0)
                else:
                    zm = (z0 + c11 + c22) * (1.0 / 3.0)
                o_ref[z_row, sl, :] = zm
            else:
                if logzooms:
                    o_ref[z_row + 0, sl, :] = jnp.log(z0)
                    o_ref[z_row + 1, sl, :] = jnp.log(c11)
                    o_ref[z_row + 2, sl, :] = jnp.log(c22)
                else:
                    o_ref[z_row + 0, sl, :] = z0
                    o_ref[z_row + 1, sl, :] = c11
                    o_ref[z_row + 2, sl, :] = c22

        if need_s:
            o_ref[s_row + 0, sl, :] = s0
            o_ref[s_row + 1, sl, :] = s1
            o_ref[s_row + 2, sl, :] = s2

        if need_r:
            # Rotation matrix R1 = M @ inv(Z @ S) via closed-form tri inverse.
            i00 = jnp.where(neg, -inv_c00, inv_c00)     # 1/z0
            i01 = -(s0 * inv_c11)
            i12 = -(s2 * inv_c22)
            i02 = (s0 * s2 - s1) * inv_c22
            r00 = m00 * i00
            r01 = m00 * i01 + m01 * inv_c11
            r02 = m00 * i02 + m01 * i12 + m02 * inv_c22
            r10v = m10 * i00
            r12v = m10 * i02 + m11 * i12 + m12 * inv_c22
            r20v = m20 * i00
            r22v = m20 * i02 + m21 * i12 + m22 * inv_c22

            # Euler angles, R1 = Rx @ Ry @ Rz (spm_imatrix extraction).
            s_y = jnp.clip(r02, -1.0, 1.0)
            cy = jnp.sqrt(jnp.maximum(1.0 - s_y * s_y, 0.0))   # cos(ry) >= 0
            ry = _atan2(s_y, cy)                                # = asin(s_y)
            degen = (jnp.abs(ry) - _PI_2) ** 2 < 1e-9
            # One approx reciprocal of cos(ry), shared; atan2 of two ratios
            # scaled by the same positive factor is insensitive to its error.
            inv_cy = pl.reciprocal(jnp.where(degen, 1.0, cy), approx=True)
            rx_n = _atan2(r12v * inv_cy, r22v * inv_cy)
            rz_n = _atan2(r01 * inv_cy, r00 * inv_cy)
            o_ref[r_row + 0, sl, :] = jnp.where(degen, 0.0, rx_n)
            o_ref[r_row + 1, sl, :] = ry
            o_ref[r_row + 2, sl, :] = rz_n

            # Gimbal-lock correction is rare: only pay the extra atan2 +
            # divide when some lane in this chunk is actually degenerate.
            any_degen = jnp.max(degen.astype(jnp.float32)) > 0.0

            @pl.when(any_degen)
            def _():
                r02_safe = jnp.where(jnp.abs(r02) < 1e-12, 1.0, r02)
                rz_d = _atan2(-r10v, -r20v / r02_safe)
                o_ref[r_row + 2, sl, :] = jnp.where(degen, rz_d, rz_n)


def _classic_parameters(affine, basis, logzooms):
    """(B, 4, 4) affines -> (B, n_out) stacked basis parameters."""
    assert affine.ndim == 3 and affine.shape[1:] == (4, 4), \
        "only dim=3 (4x4) affines are supported"
    n_out = _basis_layout(basis)[-1]
    B = affine.shape[0]
    S = _cdiv(B, _LANE)                      # 128-lane rows of batch

    # Tile choice: all grid blocks are full (S padded to grid*tile_s) so every
    # DMA / store is a full unmasked tile.  Batches >= 8K affines get >= 2
    # even parallel steps (so both TCs of a v7x have work); tiny batches get a
    # single tile (no extra pipeline ramp on single-TC v5e/v6e).
    if S >= 64:
        grid = max(2, _cdiv(S, _MAX_TILE))
        tile_s = _round_up(_cdiv(S, grid), _CHUNK)
    else:
        grid, tile_s = 1, _round_up(max(S, 1), _CHUNK)
    S_pad = tile_s * grid
    Bp = S_pad * _LANE

    # Only the top 3x4 of each affine is read.  Single fused pad + transpose
    # pass to element-major (12, S_pad, 128); padded lanes are zero affines
    # (NaNs downstream, sliced away below).
    x = affine[:, :3, :].reshape(B, 12).astype(jnp.float32)
    if Bp != B:
        x = jnp.pad(x, ((0, Bp - B), (0, 0)))
    x = x.reshape(S_pad, _LANE, 12).transpose(2, 0, 1)      # (12, S_pad, 128)

    kernel = functools.partial(_affine_classic_inverse_kernel,
                               num_chunks=tile_s // _CHUNK,
                               basis=basis, logzooms=logzooms)
    out = pl.pallas_call(
        kernel,
        out_shape=jax.ShapeDtypeStruct((n_out, S_pad, _LANE), jnp.float32),
        grid=(grid,),
        in_specs=[pl.BlockSpec((12, tile_s, _LANE), lambda i: (0, i, 0))],
        out_specs=pl.BlockSpec((n_out, tile_s, _LANE), lambda i: (0, i, 0)),
        compiler_params=pltpu.CompilerParams(
            dimension_semantics=("parallel",),
            vmem_limit_bytes=32 * 1024 * 1024),
    )(x)
    return out.transpose(1, 2, 0).reshape(Bp, n_out)[:B]    # (B, n_out)


@functools.partial(jax.jit, static_argnames=("basis", "logzooms"))
def affine_classic_inverse(affine, basis='CSO', logzooms=False):
    """Forward pass of nitorch AffineClassicInverse."""
    prm = _classic_parameters(affine, basis, logzooms)
    return prm.astype(affine.dtype)


# ---------------------------------------------------------------------------
# Demo / self-check
# ---------------------------------------------------------------------------
def _make_affines_np(t, r, z, s):
    """Build A = [[Rx@Ry@Rz @ diag(z) @ S, t], [0,1]] in float64 on host."""
    B = t.shape[0]
    out = np.zeros((B, 4, 4), dtype=np.float64)
    for b in range(B):
        c4, c5, c6 = np.cos(r[b])
        s4, s5, s6 = np.sin(r[b])
        Rx = np.array([[1, 0, 0], [0, c4, s4], [0, -s4, c4]])
        Ry = np.array([[c5, 0, s5], [0, 1, 0], [-s5, 0, c5]])
        Rz = np.array([[c6, s6, 0], [-s6, c6, 0], [0, 0, 1]])
        S = np.array([[1, s[b, 0], s[b, 1]], [0, 1, s[b, 2]], [0, 0, 1]])
        M = Rx @ Ry @ Rz @ np.diag(z[b]) @ S
        out[b, :3, :3] = M
        out[b, :3, 3] = t[b]
        out[b, 3, 3] = 1.0
    return out


if __name__ == "__main__":
    B = 8
    key = jax.random.PRNGKey(0)
    kt, kr, kz, ks = jax.random.split(key, 4)
    t = np.asarray(jax.random.normal(kt, (B, 3)) * 3.0, dtype=np.float64)
    r = np.asarray(jax.random.uniform(kr, (B, 3), minval=-0.5, maxval=0.5),
                   dtype=np.float64)
    z = np.exp(np.asarray(jax.random.normal(kz, (B, 3)) * 0.1,
                          dtype=np.float64))
    s = np.asarray(jax.random.normal(ks, (B, 3)) * 0.1, dtype=np.float64)

    # One gimbal-lock-adjacent affine (ry = pi/2, pure rotation) appended to
    # exercise the degenerate branch; its Euler split is not unique so only
    # well-defined quantities (T, zooms, |ry|) are checked for it.
    t_d = np.array([[1.0, -2.0, 3.0]])
    r_d = np.array([[0.3, np.pi / 2, 0.2]])
    z_d = np.ones((1, 3))
    s_d = np.zeros((1, 3))
    t_all = np.concatenate([t, t_d])
    r_all = np.concatenate([r, r_d])
    z_all = np.concatenate([z, z_d])
    s_all = np.concatenate([s, s_d])

    affine = jnp.asarray(_make_affines_np(t_all, r_all, z_all, s_all),
                         dtype=jnp.float32)

    # CSO (default): [T, R, mean(Z)]
    out_cso = jax.block_until_ready(affine_classic_inverse(affine, basis='CSO'))
    assert out_cso.shape == (B + 1, 7), out_cso.shape
    exp_cso = np.concatenate([t, r, z.mean(-1, keepdims=True)], axis=-1)
    err_cso = float(np.max(np.abs(np.asarray(out_cso[:B]) - exp_cso)))
    assert err_cso < 1e-3, f"CSO max abs error {err_cso}"
    deg = np.asarray(out_cso[B])
    assert np.max(np.abs(deg[:3] - t_d[0])) < 1e-3, deg
    assert abs(abs(deg[4]) - np.pi / 2) < 1e-3, deg
    assert abs(deg[6] - 1.0) < 1e-3, deg

    # Aff+: [T, R, Z, S] — checks zooms and shears as well.
    out_aff = jax.block_until_ready(affine_classic_inverse(affine, basis='Aff+'))
    assert out_aff.shape == (B + 1, 12), out_aff.shape
    exp_aff = np.concatenate([t, r, z, s], axis=-1)
    err_aff = float(np.max(np.abs(np.asarray(out_aff[:B]) - exp_aff)))
    assert err_aff < 1e-3, f"Aff+ max abs error {err_aff}"

    # D with logzooms: [T, mean(log Z)] — exercises the fused log-zoom path.
    out_d = jax.block_until_ready(
        affine_classic_inverse(affine, basis='D', logzooms=True))
    assert out_d.shape == (B + 1, 4), out_d.shape
    exp_d = np.concatenate([t, np.log(z).mean(-1, keepdims=True)], axis=-1)
    err_d = float(np.max(np.abs(np.asarray(out_d[:B]) - exp_d)))
    assert err_d < 1e-3, f"D(logzooms) max abs error {err_d}"

    print("KERNEL_OK")
</pallas_src>

<mosaic_0001>
module attributes {stable_mosaic.version = 11 : i64} {
  func.func @_affine_classic_inverse_kernel(%arg0: i32, %arg1: memref<12x8x128xf32, #tpu.memory_space<vmem>>, %arg2: memref<7x8x128xf32, #tpu.memory_space<vmem>>) attributes {dimension_semantics = [#tpu.dimension_semantics<parallel>], iteration_bounds = array<i64: 1>, scalar_prefetch = 0 : i64, scratch_operands = 0 : i64, tpu.core_type = #tpu.core_type<tc>, window_params = [{transform_indices = @transform_0, window_bounds = array<i64: 12, 8, 128>}, {transform_indices = @transform_1, window_bounds = array<i64: 7, 8, 128>}]} {
    %c0_i32 = arith.constant 0 : i32
    %c1_i32 = arith.constant 1 : i32
    %0 = arith.muli %c0_i32, %c1_i32 : i32
    %c0_i32_0 = arith.constant 0 : i32
    %1 = arith.addi %c0_i32_0, %0 : i32
    %c8_i32 = arith.constant 8 : i32
    %2 = arith.muli %1, %c8_i32 : i32
    %3 = tpu.assume_multiple %2, 8 : i32
    %c3 = arith.constant 3 : index
    %4 = arith.index_cast %3 : i32 to index
    %c0 = arith.constant 0 : index
    %5 = vector.load %arg1[%c3, %4, %c0] : memref<12x8x128xf32, #tpu.memory_space<vmem>>, vector<1x8x128xf32>
    %6 = vector.shape_cast %5 : vector<1x8x128xf32> to vector<8x128xf32>
    %c0_1 = arith.constant 0 : index
    %7 = arith.index_cast %3 : i32 to index
    %c0_2 = arith.constant 0 : index
    %8 = vector.load %arg2[%c0_1, %7, %c0_2] : memref<7x8x128xf32, #tpu.memory_space<vmem>>, vector<1x8x128xf32>
    %9 = vector.shape_cast %8 : vector<1x8x128xf32> to vector<8x128xf32>
    %10 = vector.shape_cast %6 : vector<8x128xf32> to vector<1x8x128xf32>
    tpu.vector_store %arg2[%c0_1, %7, %c0_2], %10 {strides = array<i32>} : memref<7x8x128xf32, #tpu.memory_space<vmem>>, vector<1x8x128xf32>,
    %c7 = arith.constant 7 : index
    %11 = arith.index_cast %3 : i32 to index
    %c0_3 = arith.constant 0 : index
    %12 = vector.load %arg1[%c7, %11, %c0_3] : memref<12x8x128xf32, #tpu.memory_space<vmem>>, vector<1x8x128xf32>
    %13 = vector.shape_cast %12 : vector<1x8x128xf32> to vector<8x128xf32>
    %c1 = arith.constant 1 : index
    %14 = arith.index_cast %3 : i32 to index
    %c0_4 = arith.constant 0 : index
    %15 = vector.load %arg2[%c1, %14, %c0_4] : memref<7x8x128xf32, #tpu.memory_space<vmem>>, vector<1x8x128xf32>
    %16 = vector.shape_cast %15 : vector<1x8x128xf32> to vector<8x128xf32>
    %17 = vector.shape_cast %13 : vector<8x128xf32> to vector<1x8x128xf32>
    tpu.vector_store %arg2[%c1, %14, %c0_4], %17 {strides = array<i32>} : memref<7x8x128xf32, #tpu.memory_space<vmem>>, vector<1x8x128xf32>,
    %c11 = arith.constant 11 : index
    %18 = arith.index_cast %3 : i32 to index
    %c0_5 = arith.constant 0 : index
    %19 = vector.load %arg1[%c11, %18, %c0_5] : memref<12x8x128xf32, #tpu.memory_space<vmem>>, vector<1x8x128xf32>
    %20 = vector.shape_cast %19 : vector<1x8x128xf32> to vector<8x128xf32>
    %c2 = arith.constant 2 : index
    %21 = arith.index_cast %3 : i32 to index
    %c0_6 = arith.constant 0 : index
    %22 = vector.load %arg2[%c2, %21, %c0_6] : memref<7x8x128xf32, #tpu.memory_space<vmem>>, vector<1x8x128xf32>
    %23 = vector.shape_cast %22 : vector<1x8x128xf32> to vector<8x128xf32>
    %24 = vector.shape_cast %20 : vector<8x128xf32> to vector<1x8x128xf32>
    tpu.vector_store %arg2[%c2, %21, %c0_6], %24 {strides = array<i32>} : memref<7x8x128xf32, #tpu.memory_space<vmem>>, vector<1x8x128xf32>,
    %c0_7 = arith.constant 0 : index
    %25 = arith.index_cast %3 : i32 to index
    %c0_8 = arith.constant 0 : index
    %26 = vector.load %arg1[%c0_7, %25, %c0_8] : memref<12x8x128xf32, #tpu.memory_space<vmem>>, vector<1x8x128xf32>
    %27 = vector.shape_cast %26 : vector<1x8x128xf32> to vector<8x128xf32>
    %c1_9 = arith.constant 1 : index
    %28 = arith.index_cast %3 : i32 to index
    %c0_10 = arith.constant 0 : index
    %29 = vector.load %arg1[%c1_9, %28, %c0_10] : memref<12x8x128xf32, #tpu.memory_space<vmem>>, vector<1x8x128xf32>
    %30 = vector.shape_cast %29 : vector<1x8x128xf32> to vector<8x128xf32>
    %c2_11 = arith.constant 2 : index
    %31 = arith.index_cast %3 : i32 to index
    %c0_12 = arith.constant 0 : index
    %32 = vector.load %arg1[%c2_11, %31, %c0_12] : memref<12x8x128xf32, #tpu.memory_space<vmem>>, vector<1x8x128xf32>
    %33 = vector.shape_cast %32 : vector<1x8x128xf32> to vector<8x128xf32>
    %c4 = arith.constant 4 : index
    %34 = arith.index_cast %3 : i32 to index
    %c0_13 = arith.constant 0 : index
    %35 = vector.load %arg1[%c4, %34, %c0_13] : memref<12x8x128xf32, #tpu.memory_space<vmem>>, vector<1x8x128xf32>
    %36 = vector.shape_cast %35 : vector<1x8x128xf32> to vector<8x128xf32>
    %c5 = arith.constant 5 : index
    %37 = arith.index_cast %3 : i32 to index
    %c0_14 = arith.constant 0 : index
    %38 = vector.load %arg1[%c5, %37, %c0_14] : memref<12x8x128xf32, #tpu.memory_space<vmem>>, vector<1x8x128xf32>
    %39 = vector.shape_cast %38 : vector<1x8x128xf32> to vector<8x128xf32>
    %c6 = arith.constant 6 : index
    %40 = arith.index_cast %3 : i32 to index
    %c0_15 = arith.constant 0 : index
    %41 = vector.load %arg1[%c6, %40, %c0_15] : memref<12x8x128xf32, #tpu.memory_space<vmem>>, vector<1x8x128xf32>
    %42 = vector.shape_cast %41 : vector<1x8x128xf32> to vector<8x128xf32>
    %c8 = arith.constant 8 : index
    %43 = arith.index_cast %3 : i32 to index
    %c0_16 = arith.constant 0 : index
    %44 = vector.load %arg1[%c8, %43, %c0_16] : memref<12x8x128xf32, #tpu.memory_space<vmem>>, vector<1x8x128xf32>
    %45 = vector.shape_cast %44 : vector<1x8x128xf32> to vector<8x128xf32>
    %c9 = arith.constant 9 : index
    %46 = arith.index_cast %3 : i32 to index
    %c0_17 = arith.constant 0 : index
    %47 = vector.load %arg1[%c9, %46, %c0_17] : memref<12x8x128xf32, #tpu.memory_space<vmem>>, vector<1x8x128xf32>
    %48 = vector.shape_cast %47 : vector<1x8x128xf32> to vector<8x128xf32>
    %c10 = arith.constant 10 : index
    %49 = arith.index_cast %3 : i32 to index
    %c0_18 = arith.constant 0 : index
    %50 = vector.load %arg1[%c10, %49, %c0_18] : memref<12x8x128xf32, #tpu.memory_space<vmem>>, vector<1x8x128xf32>
    %51 = vector.shape_cast %50 : vector<1x8x128xf32> to vector<8x128xf32>
    %52 = arith.mulf %27, %27 : vector<8x128xf32>
    %53 = arith.mulf %36, %36 : vector<8x128xf32>
    %54 = arith.addf %52, %53 : vector<8x128xf32>
    %55 = arith.mulf %45, %45 : vector<8x128xf32>
    %56 = arith.addf %54, %55 : vector<8x128xf32>
    %57 = arith.mulf %27, %30 : vector<8x128xf32>
    %58 = arith.mulf %36, %39 : vector<8x128xf32>
    %59 = arith.addf %57, %58 : vector<8x128xf32>
    %60 = arith.mulf %45, %48 : vector<8x128xf32>
    %61 = arith.addf %59, %60 : vector<8x128xf32>
    %62 = arith.mulf %27, %33 : vector<8x128xf32>
    %63 = arith.mulf %36, %42 : vector<8x128xf32>
    %64 = arith.addf %62, %63 : vector<8x128xf32>
    %65 = arith.mulf %45, %51 : vector<8x128xf32>
    %66 = arith.addf %64, %65 : vector<8x128xf32>
    %67 = arith.mulf %30, %30 : vector<8x128xf32>
    %68 = arith.mulf %39, %39 : vector<8x128xf32>
    %69 = arith.addf %67, %68 : vector<8x128xf32>
    %70 = arith.mulf %48, %48 : vector<8x128xf32>
    %71 = arith.addf %69, %70 : vector<8x128xf32>
    %72 = arith.mulf %30, %33 : vector<8x128xf32>
    %73 = arith.mulf %39, %42 : vector<8x128xf32>
    %74 = arith.addf %72, %73 : vector<8x128xf32>
    %75 = arith.mulf %48, %51 : vector<8x128xf32>
    %76 = arith.addf %74, %75 : vector<8x128xf32>
    %77 = arith.mulf %33, %33 : vector<8x128xf32>
    %78 = arith.mulf %42, %42 : vector<8x128xf32>
    %79 = arith.addf %77, %78 : vector<8x128xf32>
    %80 = arith.mulf %51, %51 : vector<8x128xf32>
    %81 = arith.addf %79, %80 : vector<8x128xf32>
    %82 = math.rsqrt %56 : vector<8x128xf32>
    %83 = arith.mulf %56, %82 : vector<8x128xf32>
    %84 = arith.mulf %82, %82 : vector<8x128xf32>
    %85 = arith.mulf %61, %84 : vector<8x128xf32>
    %86 = arith.mulf %66, %84 : vector<8x128xf32>
    %87 = arith.mulf %61, %61 : vector<8x128xf32>
    %88 = arith.mulf %87, %84 : vector<8x128xf32>
    %89 = arith.subf %71, %88 : vector<8x128xf32>
    %cst = arith.constant 0.000000e+00 : f32
    %90 = vector.broadcast %cst : f32 to vector<8x128xf32>
    %91 = arith.maximumf %89, %90 : vector<8x128xf32>
    %92 = math.rsqrt %91 : vector<8x128xf32>
    %93 = arith.mulf %91, %92 : vector<8x128xf32>
    %94 = arith.mulf %61, %66 : vector<8x128xf32>
    %95 = arith.mulf %94, %84 : vector<8x128xf32>
    %96 = arith.subf %76, %95 : vector<8x128xf32>
    %97 = arith.mulf %96, %92 : vector<8x128xf32>
    %98 = arith.mulf %97, %92 : vector<8x128xf32>
    %99 = arith.mulf %66, %66 : vector<8x128xf32>
    %100 = arith.mulf %99, %84 : vector<8x128xf32>
    %101 = arith.subf %81, %100 : vector<8x128xf32>
    %102 = arith.mulf %97, %97 : vector<8x128xf32>
    %103 = arith.subf %101, %102 : vector<8x128xf32>
    %cst_19 = arith.constant 0.000000e+00 : f32
    %104 = vector.broadcast %cst_19 : f32 to vector<8x128xf32>
    %105 = arith.maximumf %103, %104 : vector<8x128xf32>
    %106 = math.rsqrt %105 : vector<8x128xf32>
    %107 = arith.mulf %105, %106 : vector<8x128xf32>
    %108 = arith.mulf %39, %51 : vector<8x128xf32>
    %109 = arith.mulf %42, %48 : vector<8x128xf32>
    %110 = arith.subf %108, %109 : vector<8x128xf32>
    %111 = arith.mulf %27, %110 : vector<8x128xf32>
    %112 = arith.mulf %36, %51 : vector<8x128xf32>
    %113 = arith.mulf %42, %45 : vector<8x128xf32>
    %114 = arith.subf %112, %113 : vector<8x128xf32>
    %115 = arith.mulf %30, %114 : vector<8x128xf32>
    %116 = arith.subf %111, %115 : vector<8x128xf32>
    %117 = arith.mulf %36, %48 : vector<8x128xf32>
    %118 = arith.mulf %39, %45 : vector<8x128xf32>
    %119 = arith.subf %117, %118 : vector<8x128xf32>
    %120 = arith.mulf %33, %119 : vector<8x128xf32>
    %121 = arith.addf %116, %120 : vector<8x128xf32>
    %cst_20 = arith.constant 0.000000e+00 : f32
    %122 = vector.broadcast %cst_20 : f32 to vector<8x128xf32>
    %123 = arith.cmpf olt, %121, %122 : vector<8x128xf32>
    %cst_21 = arith.constant 0.000000e+00 : f32
    %124 = vector.broadcast %cst_21 : f32 to vector<8x128xf32>
    %125 = arith.subf %124, %83 : vector<8x128xf32>
    %126 = arith.select %123, %125, %83 : vector<8x128xi1>, vector<8x128xf32>
    %127 = arith.addf %126, %93 : vector<8x128xf32>
    %128 = arith.addf %127, %107 : vector<8x128xf32>
    %cst_22 = arith.constant 0.333333343 : f32
    %129 = vector.broadcast %cst_22 : f32 to vector<8x128xf32>
    %130 = arith.mulf %128, %129 : vector<8x128xf32>
    %c6_23 = arith.constant 6 : index
    %131 = arith.index_cast %3 : i32 to index
    %c0_24 = arith.constant 0 : index
    %132 = vector.load %arg2[%c6_23, %131, %c0_24] : memref<7x8x128xf32, #tpu.memory_space<vmem>>, vector<1x8x128xf32>
    %133 = vector.shape_cast %132 : vector<1x8x128xf32> to vector<8x128xf32>
    %134 = vector.shape_cast %130 : vector<8x128xf32> to vector<1x8x128xf32>
    tpu.vector_store %arg2[%c6_23, %131, %c0_24], %134 {strides = array<i32>} : memref<7x8x128xf32, #tpu.memory_space<vmem>>, vector<1x8x128xf32>,
    %cst_25 = arith.constant 0.000000e+00 : f32
    %135 = vector.broadcast %cst_25 : f32 to vector<8x128xf32>
    %136 = arith.subf %135, %82 : vector<8x128xf32>
    %137 = arith.select %123, %136, %82 : vector<8x128xi1>, vector<8x128xf32>
    %138 = arith.mulf %85, %92 : vector<8x128xf32>
    %cst_26 = arith.constant 0.000000e+00 : f32
    %139 = vector.broadcast %cst_26 : f32 to vector<8x128xf32>
    %140 = arith.subf %139, %138 : vector<8x128xf32>
    %141 = arith.mulf %98, %106 : vector<8x128xf32>
    %cst_27 = arith.constant 0.000000e+00 : f32
    %142 = vector.broadcast %cst_27 : f32 to vector<8x128xf32>
    %143 = arith.subf %142, %141 : vector<8x128xf32>
    %144 = arith.mulf %85, %98 : vector<8x128xf32>
    %145 = arith.subf %144, %86 : vector<8x128xf32>
    %146 = arith.mulf %145, %106 : vector<8x128xf32>
    %147 = arith.mulf %27, %137 : vector<8x128xf32>
    %148 = arith.mulf %27, %140 : vector<8x128xf32>
    %149 = arith.mulf %30, %92 : vector<8x128xf32>
    %150 = arith.addf %148, %149 : vector<8x128xf32>
    %151 = arith.mulf %27, %146 : vector<8x128xf32>
    %152 = arith.mulf %30, %143 : vector<8x128xf32>
    %153 = arith.addf %151, %152 : vector<8x128xf32>
    %154 = arith.mulf %33, %106 : vector<8x128xf32>
    %155 = arith.addf %153, %154 : vector<8x128xf32>
    %156 = arith.mulf %36, %137 : vector<8x128xf32>
    %157 = arith.mulf %36, %146 : vector<8x128xf32>
    %158 = arith.mulf %39, %143 : vector<8x128xf32>
    %159 = arith.addf %157, %158 : vector<8x128xf32>
    %160 = arith.mulf %42, %106 : vector<8x128xf32>
    %161 = arith.addf %159, %160 : vector<8x128xf32>
    %162 = arith.mulf %45, %137 : vector<8x128xf32>
    %163 = arith.mulf %45, %146 : vector<8x128xf32>
    %164 = arith.mulf %48, %143 : vector<8x128xf32>
    %165 = arith.addf %163, %164 : vector<8x128xf32>
    %166 = arith.mulf %51, %106 : vector<8x128xf32>
    %167 = arith.addf %165, %166 : vector<8x128xf32>
    %cst_28 = arith.constant -1.000000e+00 : f32
    %cst_29 = arith.constant 1.000000e+00 : f32
    %168 = vector.broadcast %cst_28 : f32 to vector<8x128xf32>
    %169 = arith.maximumf %168, %155 : vector<8x128xf32>
    %170 = vector.broadcast %cst_29 : f32 to vector<8x128xf32>
    %171 = arith.minimumf %170, %169 : vector<8x128xf32>
    %172 = arith.mulf %171, %171 : vector<8x128xf32>
    %cst_30 = arith.constant 1.000000e+00 : f32
    %173 = vector.broadcast %cst_30 : f32 to vector<8x128xf32>
    %174 = arith.subf %173, %172 : vector<8x128xf32>
    %cst_31 = arith.constant 0.000000e+00 : f32
    %175 = vector.broadcast %cst_31 : f32 to vector<8x128xf32>
    %176 = arith.maximumf %174, %175 : vector<8x128xf32>
    %177 = math.sqrt %176 : vector<8x128xf32>
    %178 = math.absf %171 : vector<8x128xf32>
    %179 = math.absf %177 : vector<8x128xf32>
    %cst_32 = arith.constant 2.41421366 : f32
    %180 = vector.broadcast %cst_32 : f32 to vector<8x128xf32>
    %181 = arith.mulf %180, %179 : vector<8x128xf32>
    %182 = arith.cmpf ogt, %178, %181 : vector<8x128xf32>
    %cst_33 = arith.constant 0.414213568 : f32
    %183 = vector.broadcast %cst_33 : f32 to vector<8x128xf32>
    %184 = arith.mulf %183, %179 : vector<8x128xf32>
    %185 = arith.cmpf ogt, %178, %184 : vector<8x128xf32>
    %cst_34 = arith.constant 0.000000e+00 : f32
    %186 = vector.broadcast %cst_34 : f32 to vector<8x128xf32>
    %187 = arith.subf %186, %179 : vector<8x128xf32>
    %188 = arith.subf %178, %179 : vector<8x128xf32>
    %189 = arith.select %185, %188, %178 : vector<8x128xi1>, vector<8x128xf32>
    %190 = arith.select %182, %187, %189 : vector<8x128xi1>, vector<8x128xf32>
    %191 = arith.addf %178, %179 : vector<8x128xf32>
    %192 = arith.select %185, %191, %179 : vector<8x128xi1>, vector<8x128xf32>
    %193 = arith.select %182, %178, %192 : vector<8x128xi1>, vector<8x128xf32>
    %cst_35 = arith.constant 0.000000e+00 : f32
    %194 = vector.broadcast %cst_35 : f32 to vector<8x128xf32>
    %195 = arith.cmpf oeq, %193, %194 : vector<8x128xf32>
    %cst_36 = arith.constant 1.000000e+00 : f32
    %196 = vector.broadcast %cst_36 : f32 to vector<8x128xf32>
    %197 = arith.select %195, %196, %193 : vector<8x128xi1>, vector<8x128xf32>
    %198 = arith.divf %190, %197 : vector<8x128xf32>
    %cst_37 = arith.constant 0.785398185 : f32
    %cst_38 = arith.constant 0.000000e+00 : f32
    %199 = vector.broadcast %cst_37 : f32 to vector<8x128xf32>
    %200 = vector.broadcast %cst_38 : f32 to vector<8x128xf32>
    %201 = arith.select %185, %199, %200 : vector<8x128xi1>, vector<8x128xf32>
    %cst_39 = arith.constant 1.57079637 : f32
    %202 = vector.broadcast %cst_39 : f32 to vector<8x128xf32>
    %203 = arith.select %182, %202, %201 : vector<8x128xi1>, vector<8x128xf32>
    %204 = arith.mulf %198, %198 : vector<8x128xf32>
    %cst_40 = arith.constant 0.0805374458 : f32
    %205 = vector.broadcast %cst_40 : f32 to vector<8x128xf32>
    %206 = arith.mulf %205, %204 : vector<8x128xf32>
    %cst_41 = arith.constant 0.138776854 : f32
    %207 = vector.broadcast %cst_41 : f32 to vector<8x128xf32>
    %208 = arith.subf %206, %207 : vector<8x128xf32>
    %209 = arith.mulf %208, %204 : vector<8x128xf32>
    %cst_42 = arith.constant 0.199777111 : f32
    %210 = vector.broadcast %cst_42 : f32 to vector<8x128xf32>
    %211 = arith.addf %209, %210 : vector<8x128xf32>
    %212 = arith.mulf %211, %204 : vector<8x128xf32>
    %cst_43 = arith.constant 0.333329499 : f32
    %213 = vector.broadcast %cst_43 : f32 to vector<8x128xf32>
    %214 = arith.subf %212, %213 : vector<8x128xf32>
    %215 = arith.mulf %214, %204 : vector<8x128xf32>
    %216 = arith.mulf %215, %198 : vector<8x128xf32>
    %217 = arith.addf %216, %198 : vector<8x128xf32>
    %218 = arith.addf %203, %217 : vector<8x128xf32>
    %cst_44 = arith.constant 0.000000e+00 : f32
    %219 = vector.broadcast %cst_44 : f32 to vector<8x128xf32>
    %220 = arith.cmpf oge, %177, %219 : vector<8x128xf32>
    %cst_45 = arith.constant 3.14159274 : f32
    %221 = vector.broadcast %cst_45 : f32 to vector<8x128xf32>
    %222 = arith.subf %221, %218 : vector<8x128xf32>
    %223 = arith.select %220, %218, %222 : vector<8x128xi1>, vector<8x128xf32>
    %cst_46 = arith.constant 0.000000e+00 : f32
    %224 = vector.broadcast %cst_46 : f32 to vector<8x128xf32>
    %225 = arith.cmpf oge, %171, %224 : vector<8x128xf32>
    %cst_47 = arith.constant 0.000000e+00 : f32
    %226 = vector.broadcast %cst_47 : f32 to vector<8x128xf32>
    %227 = arith.subf %226, %223 : vector<8x128xf32>
    %228 = arith.select %225, %223, %227 : vector<8x128xi1>, vector<8x128xf32>
    %229 = math.absf %228 : vector<8x128xf32>
    %cst_48 = arith.constant 1.57079637 : f32
    %230 = vector.broadcast %cst_48 : f32 to vector<8x128xf32>
    %231 = arith.subf %229, %230 : vector<8x128xf32>
    %232 = arith.mulf %231, %231 : vector<8x128xf32>
    %cst_49 = arith.constant 9.99999971E-10 : f32
    %233 = vector.broadcast %cst_49 : f32 to vector<8x128xf32>
    %234 = arith.cmpf olt, %232, %233 : vector<8x128xf32>
    %cst_50 = arith.constant 1.000000e+00 : f32
    %235 = vector.broadcast %cst_50 : f32 to vector<8x128xf32>
    %236 = arith.select %234, %235, %177 : vector<8x128xi1>, vector<8x128xf32>
    %237 = tpu.reciprocal %236 {approx = true} : vector<8x128xf32> -> vector<8x128xf32>
    %238 = arith.mulf %161, %237 : vector<8x128xf32>
    %239 = arith.mulf %167, %237 : vector<8x128xf32>
    %240 = math.absf %238 : vector<8x128xf32>
    %241 = math.absf %239 : vector<8x128xf32>
    %cst_51 = arith.constant 2.41421366 : f32
    %242 = vector.broadcast %cst_51 : f32 to vector<8x128xf32>
    %243 = arith.mulf %242, %241 : vector<8x128xf32>
    %244 = arith.cmpf ogt, %240, %243 : vector<8x128xf32>
    %cst_52 = arith.constant 0.414213568 : f32
    %245 = vector.broadcast %cst_52 : f32 to vector<8x128xf32>
    %246 = arith.mulf %245, %241 : vector<8x128xf32>
    %247 = arith.cmpf ogt, %240, %246 : vector<8x128xf32>
    %cst_53 = arith.constant 0.000000e+00 : f32
    %248 = vector.broadcast %cst_53 : f32 to vector<8x128xf32>
    %249 = arith.subf %248, %241 : vector<8x128xf32>
    %250 = arith.subf %240, %241 : vector<8x128xf32>
    %251 = arith.select %247, %250, %240 : vector<8x128xi1>, vector<8x128xf32>
    %252 = arith.select %244, %249, %251 : vector<8x128xi1>, vector<8x128xf32>
    %253 = arith.addf %240, %241 : vector<8x128xf32>
    %254 = arith.select %247, %253, %241 : vector<8x128xi1>, vector<8x128xf32>
    %255 = arith.select %244, %240, %254 : vector<8x128xi1>, vector<8x128xf32>
    %cst_54 = arith.constant 0.000000e+00 : f32
    %256 = vector.broadcast %cst_54 : f32 to vector<8x128xf32>
    %257 = arith.cmpf oeq, %255, %256 : vector<8x128xf32>
    %cst_55 = arith.constant 1.000000e+00 : f32
    %258 = vector.broadcast %cst_55 : f32 to vector<8x128xf32>
    %259 = arith.select %257, %258, %255 : vector<8x128xi1>, vector<8x128xf32>
    %260 = arith.divf %252, %259 : vector<8x128xf32>
    %cst_56 = arith.constant 0.785398185 : f32
    %cst_57 = arith.constant 0.000000e+00 : f32
    %261 = vector.broadcast %cst_56 : f32 to vector<8x128xf32>
    %262 = vector.broadcast %cst_57 : f32 to vector<8x128xf32>
    %263 = arith.select %247, %261, %262 : vector<8x128xi1>, vector<8x128xf32>
    %cst_58 = arith.constant 1.57079637 : f32
    %264 = vector.broadcast %cst_58 : f32 to vector<8x128xf32>
    %265 = arith.select %244, %264, %263 : vector<8x128xi1>, vector<8x128xf32>
    %266 = arith.mulf %260, %260 : vector<8x128xf32>
    %cst_59 = arith.constant 0.0805374458 : f32
    %267 = vector.broadcast %cst_59 : f32 to vector<8x128xf32>
    %268 = arith.mulf %267, %266 : vector<8x128xf32>
    %cst_60 = arith.constant 0.138776854 : f32
    %269 = vector.broadcast %cst_60 : f32 to vector<8x128xf32>
    %270 = arith.subf %268, %269 : vector<8x128xf32>
    %271 = arith.mulf %270, %266 : vector<8x128xf32>
    %cst_61 = arith.constant 0.199777111 : f32
    %272 = vector.broadcast %cst_61 : f32 to vector<8x128xf32>
    %273 = arith.addf %271, %272 : vector<8x128xf32>
    %274 = arith.mulf %273, %266 : vector<8x128xf32>
    %cst_62 = arith.constant 0.333329499 : f32
    %275 = vector.broadcast %cst_62 : f32 to vector<8x128xf32>
    %276 = arith.subf %274, %275 : vector<8x128xf32>
    %277 = arith.mulf %276, %266 : vector<8x128xf32>
    %278 = arith.mulf %277, %260 : vector<8x128xf32>
    %279 = arith.addf %278, %260 : vector<8x128xf32>
    %280 = arith.addf %265, %279 : vector<8x128xf32>
    %cst_63 = arith.constant 0.000000e+00 : f32
    %281 = vector.broadcast %cst_63 : f32 to vector<8x128xf32>
    %282 = arith.cmpf oge, %239, %281 : vector<8x128xf32>
    %cst_64 = arith.constant 3.14159274 : f32
    %283 = vector.broadcast %cst_64 : f32 to vector<8x128xf32>
    %284 = arith.subf %283, %280 : vector<8x128xf32>
    %285 = arith.select %282, %280, %284 : vector<8x128xi1>, vector<8x128xf32>
    %cst_65 = arith.constant 0.000000e+00 : f32
    %286 = vector.broadcast %cst_65 : f32 to vector<8x128xf32>
    %287 = arith.cmpf oge, %238, %286 : vector<8x128xf32>
    %cst_66 = arith.constant 0.000000e+00 : f32
    %288 = vector.broadcast %cst_66 : f32 to vector<8x128xf32>
    %289 = arith.subf %288, %285 : vector<8x128xf32>
    %290 = arith.select %287, %285, %289 : vector<8x128xi1>, vector<8x128xf32>
    %291 = arith.mulf %150, %237 : vector<8x128xf32>
    %292 = arith.mulf %147, %237 : vector<8x128xf32>
    %293 = math.absf %291 : vector<8x128xf32>
    %294 = math.absf %292 : vector<8x128xf32>
    %cst_67 = arith.constant 2.41421366 : f32
    %295 = vector.broadcast %cst_67 : f32 to vector<8x128xf32>
    %296 = arith.mulf %295, %294 : vector<8x128xf32>
    %297 = arith.cmpf ogt, %293, %296 : vector<8x128xf32>
    %cst_68 = arith.constant 0.414213568 : f32
    %298 = vector.broadcast %cst_68 : f32 to vector<8x128xf32>
    %299 = arith.mulf %298, %294 : vector<8x128xf32>
    %300 = arith.cmpf ogt, %293, %299 : vector<8x128xf32>
    %cst_69 = arith.constant 0.000000e+00 : f32
    %301 = vector.broadcast %cst_69 : f32 to vector<8x128xf32>
    %302 = arith.subf %301, %294 : vector<8x128xf32>
    %303 = arith.subf %293, %294 : vector<8x128xf32>
    %304 = arith.select %300, %303, %293 : vector<8x128xi1>, vector<8x128xf32>
    %305 = arith.select %297, %302, %304 : vector<8x128xi1>, vector<8x128xf32>
    %306 = arith.addf %293, %294 : vector<8x128xf32>
    %307 = arith.select %300, %306, %294 : vector<8x128xi1>, vector<8x128xf32>
    %308 = arith.select %297, %293, %307 : vector<8x128xi1>, vector<8x128xf32>
    %cst_70 = arith.constant 0.000000e+00 : f32
    %309 = vector.broadcast %cst_70 : f32 to vector<8x128xf32>
    %310 = arith.cmpf oeq, %308, %309 : vector<8x128xf32>
    %cst_71 = arith.constant 1.000000e+00 : f32
    %311 = vector.broadcast %cst_71 : f32 to vector<8x128xf32>
    %312 = arith.select %310, %311, %308 : vector<8x128xi1>, vector<8x128xf32>
    %313 = arith.divf %305, %312 : vector<8x128xf32>
    %cst_72 = arith.constant 0.785398185 : f32
    %cst_73 = arith.constant 0.000000e+00 : f32
    %314 = vector.broadcast %cst_72 : f32 to vector<8x128xf32>
    %315 = vector.broadcast %cst_73 : f32 to vector<8x128xf32>
    %316 = arith.select %300, %314, %315 : vector<8x128xi1>, vector<8x128xf32>
    %cst_74 = arith.constant 1.57079637 : f32
    %317 = vector.broadcast %cst_74 : f32 to vector<8x128xf32>
    %318 = arith.select %297, %317, %316 : vector<8x128xi1>, vector<8x128xf32>
    %319 = arith.mulf %313, %313 : vector<8x128xf32>
    %cst_75 = arith.constant 0.0805374458 : f32
    %320 = vector.broadcast %cst_75 : f32 to vector<8x128xf32>
    %321 = arith.mulf %320, %319 : vector<8x128xf32>
    %cst_76 = arith.constant 0.138776854 : f32
    %322 = vector.broadcast %cst_76 : f32 to vector<8x128xf32>
    %323 = arith.subf %321, %322 : vector<8x128xf32>
    %324 = arith.mulf %323, %319 : vector<8x128xf32>
    %cst_77 = arith.constant 0.199777111 : f32
    %325 = vector.broadcast %cst_77 : f32 to vector<8x128xf32>
    %326 = arith.addf %324, %325 : vector<8x128xf32>
    %327 = arith.mulf %326, %319 : vector<8x128xf32>
    %cst_78 = arith.constant 0.333329499 : f32
    %328 = vector.broadcast %cst_78 : f32 to vector<8x128xf32>
    %329 = arith.subf %327, %328 : vector<8x128xf32>
    %330 = arith.mulf %329, %319 : vector<8x128xf32>
    %331 = arith.mulf %330, %313 : vector<8x128xf32>
    %332 = arith.addf %331, %313 : vector<8x128xf32>
    %333 = arith.addf %318, %332 : vector<8x128xf32>
    %cst_79 = arith.constant 0.000000e+00 : f32
    %334 = vector.broadcast %cst_79 : f32 to vector<8x128xf32>
    %335 = arith.cmpf oge, %292, %334 : vector<8x128xf32>
    %cst_80 = arith.constant 3.14159274 : f32
    %336 = vector.broadcast %cst_80 : f32 to vector<8x128xf32>
    %337 = arith.subf %336, %333 : vector<8x128xf32>
    %338 = arith.select %335, %333, %337 : vector<8x128xi1>, vector<8x128xf32>
    %cst_81 = arith.constant 0.000000e+00 : f32
    %339 = vector.broadcast %cst_81 : f32 to vector<8x128xf32>
    %340 = arith.cmpf oge, %291, %339 : vector<8x128xf32>
    %cst_82 = arith.constant 0.000000e+00 : f32
    %341 = vector.broadcast %cst_82 : f32 to vector<8x128xf32>
    %342 = arith.subf %341, %338 : vector<8x128xf32>
    %343 = arith.select %340, %338, %342 : vector<8x128xi1>, vector<8x128xf32>
    %cst_83 = arith.constant 0.000000e+00 : f32
    %344 = vector.broadcast %cst_83 : f32 to vector<8x128xf32>
    %345 = arith.select %234, %344, %290 : vector<8x128xi1>, vector<8x128xf32>
    %c3_84 = arith.constant 3 : index
    %346 = arith.index_cast %3 : i32 to index
    %c0_85 = arith.constant 0 : index
    %347 = vector.load %arg2[%c3_84, %346, %c0_85] : memref<7x8x128xf32, #tpu.memory_space<vmem>>, vector<1x8x128xf32>
    %348 = vector.shape_cast %347 : vector<1x8x128xf32> to vector<8x128xf32>
    %349 = vector.shape_cast %345 : vector<8x128xf32> to vector<1x8x128xf32>
    tpu.vector_store %arg2[%c3_84, %346, %c0_85], %349 {strides = array<i32>} : memref<7x8x128xf32, #tpu.memory_space<vmem>>, vector<1x8x128xf32>,
    %c4_86 = arith.constant 4 : index
    %350 = arith.index_cast %3 : i32 to index
    %c0_87 = arith.constant 0 : index
    %351 = vector.load %arg2[%c4_86, %350, %c0_87] : memref<7x8x128xf32, #tpu.memory_space<vmem>>, vector<1x8x128xf32>
    %352 = vector.shape_cast %351 : vector<1x8x128xf32> to vector<8x128xf32>
    %353 = vector.shape_cast %228 : vector<8x128xf32> to vector<1x8x128xf32>
    tpu.vector_store %arg2[%c4_86, %350, %c0_87], %353 {strides = array<i32>} : memref<7x8x128xf32, #tpu.memory_space<vmem>>, vector<1x8x128xf32>,
    %c5_88 = arith.constant 5 : index
    %354 = arith.index_cast %3 : i32 to index
    %c0_89 = arith.constant 0 : index
    %355 = vector.load %arg2[%c5_88, %354, %c0_89] : memref<7x8x128xf32, #tpu.memory_space<vmem>>, vector<1x8x128xf32>
    %356 = vector.shape_cast %355 : vector<1x8x128xf32> to vector<8x128xf32>
    %357 = vector.shape_cast %343 : vector<8x128xf32> to vector<1x8x128xf32>
    tpu.vector_store %arg2[%c5_88, %354, %c0_89], %357 {strides = array<i32>} : memref<7x8x128xf32, #tpu.memory_space<vmem>>, vector<1x8x128xf32>,
    %358 = arith.extui %234 : vector<8x128xi1> to vector<8x128xi32>
    %359 = arith.sitofp %358 : vector<8x128xi32> to vector<8x128xf32>
    %360 = vector.shape_cast %359 : vector<8x128xf32> to vector<1x8x128xf32>
    %cst_90 = arith.constant dense<0xFF800000> : vector<1xf32>
    %361 = vector.multi_reduction <maximumf>, %360, %cst_90 [1, 2] : vector<1x8x128xf32> to vector<1xf32>
    %362 = vector.shape_cast %361 : vector<1xf32> to vector<1x1x1xf32>
    %363 = vector.extract %362[0, 0, 0] : f32 from vector<1x1x1xf32>
    %cst_91 = arith.constant 0.000000e+00 : f32
    %364 = arith.cmpf ogt, %363, %cst_91 : f32
    %365 = arith.extui %364 : i1 to i32
    %c0_i32_92 = arith.constant 0 : i32
    %366 = arith.cmpi ne, %365, %c0_i32_92 : i32
    scf.if %366 {
      %367 = math.absf %155 : vector<8x128xf32>
      %cst_94 = arith.constant 9.99999996E-13 : f32
      %368 = vector.broadcast %cst_94 : f32 to vector<8x128xf32>
      %369 = arith.cmpf olt, %367, %368 : vector<8x128xf32>
      %cst_95 = arith.constant 1.000000e+00 : f32
      %370 = vector.broadcast %cst_95 : f32 to vector<8x128xf32>
      %371 = arith.select %369, %370, %155 : vector<8x128xi1>, vector<8x128xf32>
      %cst_96 = arith.constant 0.000000e+00 : f32
      %372 = vector.broadcast %cst_96 : f32 to vector<8x128xf32>
      %373 = arith.subf %372, %156 : vector<8x128xf32>
      %cst_97 = arith.constant 0.000000e+00 : f32
      %374 = vector.broadcast %cst_97 : f32 to vector<8x128xf32>
      %375 = arith.subf %374, %162 : vector<8x128xf32>
      %376 = arith.divf %375, %371 : vector<8x128xf32>
      %377 = math.absf %373 : vector<8x128xf32>
      %378 = math.absf %376 : vector<8x128xf32>
      %cst_98 = arith.constant 2.41421366 : f32
      %379 = vector.broadcast %cst_98 : f32 to vector<8x128xf32>
      %380 = arith.mulf %379, %378 : vector<8x128xf32>
      %381 = arith.cmpf ogt, %377, %380 : vector<8x128xf32>
      %cst_99 = arith.constant 0.414213568 : f32
      %382 = vector.broadcast %cst_99 : f32 to vector<8x128xf32>
      %383 = arith.mulf %382, %378 : vector<8x128xf32>
      %384 = arith.cmpf ogt, %377, %383 : vector<8x128xf32>
      %cst_100 = arith.constant 0.000000e+00 : f32
      %385 = vector.broadcast %cst_100 : f32 to vector<8x128xf32>
      %386 = arith.subf %385, %378 : vector<8x128xf32>
      %387 = arith.subf %377, %378 : vector<8x128xf32>
      %388 = arith.select %384, %387, %377 : vector<8x128xi1>, vector<8x128xf32>
      %389 = arith.select %381, %386, %388 : vector<8x128xi1>, vector<8x128xf32>
      %390 = arith.addf %377, %378 : vector<8x128xf32>
      %391 = arith.select %384, %390, %378 : vector<8x128xi1>, vector<8x128xf32>
      %392 = arith.select %381, %377, %391 : vector<8x128xi1>, vector<8x128xf32>
      %cst_101 = arith.constant 0.000000e+00 : f32
      %393 = vector.broadcast %cst_101 : f32 to vector<8x128xf32>
      %394 = arith.cmpf oeq, %392, %393 : vector<8x128xf32>
      %cst_102 = arith.constant 1.000000e+00 : f32
      %395 = vector.broadcast %cst_102 : f32 to vector<8x128xf32>
      %396 = arith.select %394, %395, %392 : vector<8x128xi1>, vector<8x128xf32>
      %397 = arith.divf %389, %396 : vector<8x128xf32>
      %cst_103 = arith.constant 0.785398185 : f32
      %cst_104 = arith.constant 0.000000e+00 : f32
      %398 = vector.broadcast %cst_103 : f32 to vector<8x128xf32>
      %399 = vector.broadcast %cst_104 : f32 to vector<8x128xf32>
      %400 = arith.select %384, %398, %399 : vector<8x128xi1>, vector<8x128xf32>
      %cst_105 = arith.constant 1.57079637 : f32
      %401 = vector.broadcast %cst_105 : f32 to vector<8x128xf32>
      %402 = arith.select %381, %401, %400 : vector<8x128xi1>, vector<8x128xf32>
      %403 = arith.mulf %397, %397 : vector<8x128xf32>
      %cst_106 = arith.constant 0.0805374458 : f32
      %404 = vector.broadcast %cst_106 : f32 to vector<8x128xf32>
      %405 = arith.mulf %404, %403 : vector<8x128xf32>
      %cst_107 = arith.constant 0.138776854 : f32
      %406 = vector.broadcast %cst_107 : f32 to vector<8x128xf32>
      %407 = arith.subf %405, %406 : vector<8x128xf32>
      %408 = arith.mulf %407, %403 : vector<8x128xf32>
      %cst_108 = arith.constant 0.199777111 : f32
      %409 = vector.broadcast %cst_108 : f32 to vector<8x128xf32>
      %410 = arith.addf %408, %409 : vector<8x128xf32>
      %411 = arith.mulf %410, %403 : vector<8x128xf32>
      %cst_109 = arith.constant 0.333329499 : f32
      %412 = vector.broadcast %cst_109 : f32 to vector<8x128xf32>
      %413 = arith.subf %411, %412 : vector<8x128xf32>
      %414 = arith.mulf %413, %403 : vector<8x128xf32>
      %415 = arith.mulf %414, %397 : vector<8x128xf32>
      %416 = arith.addf %415, %397 : vector<8x128xf32>
      %417 = arith.addf %402, %416 : vector<8x128xf32>
      %cst_110 = arith.constant 0.000000e+00 : f32
      %418 = vector.broadcast %cst_110 : f32 to vector<8x128xf32>
      %419 = arith.cmpf oge, %376, %418 : vector<8x128xf32>
      %cst_111 = arith.constant 3.14159274 : f32
      %420 = vector.broadcast %cst_111 : f32 to vector<8x128xf32>
      %421 = arith.subf %420, %417 : vector<8x128xf32>
      %422 = arith.select %419, %417, %421 : vector<8x128xi1>, vector<8x128xf32>
      %cst_112 = arith.constant 0.000000e+00 : f32
      %423 = vector.broadcast %cst_112 : f32 to vector<8x128xf32>
      %424 = arith.cmpf oge, %373, %423 : vector<8x128xf32>
      %cst_113 = arith.constant 0.000000e+00 : f32
      %425 = vector.broadcast %cst_113 : f32 to vector<8x128xf32>
      %426 = arith.subf %425, %422 : vector<8x128xf32>
      %427 = arith.select %424, %422, %426 : vector<8x128xi1>, vector<8x128xf32>
      %428 = arith.select %234, %427, %343 : vector<8x128xi1>, vector<8x128xf32>
      %c5_114 = arith.constant 5 : index
      %429 = arith.index_cast %3 : i32 to index
      %c0_115 = arith.constant 0 : index
      %430 = vector.load %arg2[%c5_114, %429, %c0_115] : memref<7x8x128xf32, #tpu.memory_space<vmem>>, vector<1x8x128xf32>
      %431 = vector.shape_cast %430 : vector<1x8x128xf32> to vector<8x128xf32>
      %432 = vector.shape_cast %428 : vector<8x128xf32> to vector<1x8x128xf32>
      tpu.vector_store %arg2[%c5_114, %429, %c0_115], %432 {strides = array<i32>} : memref<7x8x128xf32, #tpu.memory_space<vmem>>, vector<1x8x128xf32>,
    } else {
    }
    %c1_i32_93 = arith.constant 1 : i32
    return
  }
  func.func @transform_0(%arg0: i32) -> (i32, i32, i32) {
    %c0_i32 = arith.constant 0 : i32
    %c0_i32_0 = arith.constant 0 : i32
    %c0_i32_1 = arith.constant 0 : i32
    return %c0_i32, %arg0, %c0_i32_0 : i32, i32, i32
  }
  func.func @transform_1(%arg0: i32) -> (i32, i32, i32) {
    %c0_i32 = arith.constant 0 : i32
    %c0_i32_0 = arith.constant 0 : i32
    %c0_i32_1 = arith.constant 0 : i32
    return %c0_i32, %arg0, %c0_i32_0 : i32, i32, i32
  }
}

</mosaic_0001>

<llo_original>
// kernel: affine_classic_inverse.1
$region0: #{affine_classic_inverse.1}
  #allocation0 [shape = 'u32[]', space=smem, size = 0x4, offset = 0x4, fixed_abs, tag = 'smem constant byte address 0x4 - core index']
  #allocation1 [shape = 'u32[72,128]{1,0:T(1,128)}', space=vmem, size = 0x9000, scoped, tag = 'internal scratch']
  %s0 = inlined_call_operand.vmem [shape: f32[12,8,128], index: 0, kind: input, shape index: {}]
  %s1 = inlined_call_operand.vmem [shape: f32[7,8,128], index: 1, kind: output, shape index: {}]
  %s2 = sld [smem:[#allocation0]]
  $region18: #{affine_classic_inverse.1} parent=0
    _
  %s4 = ssub.s32 1, %s2
  %s5 = scalar_select 0, %s4, %s2
  // Predicated region
  $region2: #{affine_classic_inverse.1} parent=0 // pred_check
    _
  $region3: #{affine_classic_inverse.1} parent=0 // pred_check_branch
    %7 = sbr.rel (0) target = $region5
  $region4: #{affine_classic_inverse.1} parent=0 // pred_region
    _
  $region5: #{affine_classic_inverse.1} parent=0 // pred_fallthru
    _
  %s8 = sadd.s32 0, 24
  %s9 = scalar_lea.vmem %s0, %s8
  %v10 = vld [vmem:[%s9] sm:$0xff]
  %11 = vst [vmem:[%s1] sm:$0xff] %v10
  %s12 = sadd.s32 0, 56
  %s13 = scalar_lea.vmem %s0, %s12
  %v14 = vld [vmem:[%s13] sm:$0xff]
  %s15 = sadd.s32 0, 8
  %s16 = scalar_lea.vmem %s1, %s15
  %17 = vst [vmem:[%s16] sm:$0xff] %v14
  %s18 = sadd.s32 0, 88
  %s19 = scalar_lea.vmem %s0, %s18
  %v20 = vld [vmem:[%s19] sm:$0xff]
  %s21 = sadd.s32 0, 16
  %s22 = scalar_lea.vmem %s1, %s21
  %23 = vst [vmem:[%s22] sm:$0xff] %v20
  %v24 = vld [vmem:[%s0] sm:$0xff]
  %s25 = scalar_lea.vmem %s0, %s15
  %v26 = vld [vmem:[%s25] sm:$0xff]
  %s27 = scalar_lea.vmem %s0, %s21
  %v28 = vld [vmem:[%s27] sm:$0xff]
  %s29 = sadd.s32 0, 32
  %s30 = scalar_lea.vmem %s0, %s29
  %v31 = vld [vmem:[%s30] sm:$0xff]
  %s32 = sadd.s32 0, 40
  %s33 = scalar_lea.vmem %s0, %s32
  %v34 = vld [vmem:[%s33] sm:$0xff]
  %s35 = sadd.s32 0, 48
  %s36 = scalar_lea.vmem %s0, %s35
  %v37 = vld [vmem:[%s36] sm:$0xff]
  %s38 = sadd.s32 0, 64
  %s39 = scalar_lea.vmem %s0, %s38
  %v40 = vld [vmem:[%s39] sm:$0xff]
  %s41 = sadd.s32 0, 72
  %s42 = scalar_lea.vmem %s0, %s41
  %v43 = vld [vmem:[%s42] sm:$0xff]
  %s44 = sadd.s32 0, 80
  %s45 = scalar_lea.vmem %s0, %s44
  %v46 = vld [vmem:[%s45] sm:$0xff]
  %v47 = vmul.f32 %v24, %v24
  %v48 = vmul.f32 %v31, %v31
  %v49 = vadd.f32 %v47, %v48
  %v50 = vmul.f32 %v40, %v40
  %v51 = vadd.f32 %v49, %v50
  %v52 = vmul.f32 %v24, %v26
  %v53 = vmul.f32 %v31, %v34
  %v54 = vadd.f32 %v52, %v53
  %v55 = vmul.f32 %v40, %v43
  %v56 = vadd.f32 %v54, %v55
  %v57 = vmul.f32 %v24, %v28
  %v58 = vmul.f32 %v31, %v37
  %v59 = vadd.f32 %v57, %v58
  %v60 = vmul.f32 %v40, %v46
  %v61 = vadd.f32 %v59, %v60
  %v62 = vmul.f32 %v26, %v26
  %v63 = vmul.f32 %v34, %v34
  %v64 = vadd.f32 %v62, %v63
  %v65 = vmul.f32 %v43, %v43
  %v66 = vadd.f32 %v64, %v65
  %v67 = vmul.f32 %v26, %v28
  %v68 = vmul.f32 %v34, %v37
  %v69 = vadd.f32 %v67, %v68
  %v70 = vmul.f32 %v43, %v46
  %v71 = vadd.f32 %v69, %v70
  %v72 = vmul.f32 %v28, %v28
  %v73 = vmul.f32 %v37, %v37
  %v74 = vadd.f32 %v72, %v73
  %v75 = vmul.f32 %v46, %v46
  %v76 = vadd.f32 %v74, %v75
  %v77 = vrsqrt.pop %v51
  %v78 = vmul.f32 %v77, %v51
  %v79 = vmul.f32 %v78, %v77
  %v80 = vmul.f32 0.5, %v79
  %v81 = vsub.f32 1.5, %v80
  %v82 = vmul.f32 %v77, %v81
  %vm83 = vweird.f32 %v51
  %vm84 = vweird.f32 %v77
  %vm85 = vmor %vm83, %vm84
  %v86 = vsel %vm85, %v77, %v82
  %v87 = vmul.f32 %v51, %v86
  %v88 = vmul.f32 %v86, %v86
  %v89 = vmul.f32 %v56, %v88
  %v90 = vmul.f32 %v61, %v88
  %v91 = vmul.f32 %v56, %v56
  %v92 = vmul.f32 %v91, %v88
  %v93 = vsub.f32 %v66, %v92
  %v94 = vmax.f32 %v93, 0.0
  %v95 = vrsqrt.pop %v94
  %v96 = vmul.f32 %v95, %v94
  %v97 = vmul.f32 %v96, %v95
  %v98 = vmul.f32 0.5, %v97
  %v99 = vsub.f32 1.5, %v98
  %v100 = vmul.f32 %v95, %v99
  %vm101 = vweird.f32 %v94
  %vm102 = vweird.f32 %v95
  %vm103 = vmor %vm101, %vm102
  %v104 = vsel %vm103, %v95, %v100
  %v105 = vmul.f32 %v94, %v104
  %v106 = vmul.f32 %v56, %v61
  %v107 = vmul.f32 %v106, %v88
  %v108 = vsub.f32 %v71, %v107
  %v109 = vmul.f32 %v108, %v104
  %v110 = vmul.f32 %v109, %v104
  %v111 = vmul.f32 %v61, %v61
  %v112 = vmul.f32 %v111, %v88
  %v113 = vsub.f32 %v76, %v112
  %v114 = vmul.f32 %v109, %v109
  %v115 = vsub.f32 %v113, %v114
  %v116 = vmax.f32 %v115, 0.0
  %v117 = vrsqrt.pop %v116
  %v118 = vmul.f32 %v117, %v116
  %v119 = vmul.f32 %v118, %v117
  %v120 = vmul.f32 0.5, %v119
  %v121 = vsub.f32 1.5, %v120
  %v122 = vmul.f32 %v117, %v121
  %vm123 = vweird.f32 %v116
  %vm124 = vweird.f32 %v117
  %vm125 = vmor %vm123, %vm124
  %v126 = vsel %vm125, %v117, %v122
  %v127 = vmul.f32 %v116, %v126
  %v128 = vmul.f32 %v34, %v46
  %v129 = vmul.f32 %v37, %v43
  %v130 = vsub.f32 %v128, %v129
  %v131 = vmul.f32 %v24, %v130
  %v132 = vmul.f32 %v31, %v46
  %v133 = vmul.f32 %v37, %v40
  %v134 = vsub.f32 %v132, %v133
  %v135 = vmul.f32 %v26, %v134
  %v136 = vsub.f32 %v131, %v135
  %v137 = vmul.f32 %v31, %v43
  %v138 = vmul.f32 %v34, %v40
  %v139 = vsub.f32 %v137, %v138
  %v140 = vmul.f32 %v28, %v139
  %v141 = vadd.f32 %v136, %v140
  %vm142 = vcmp.lt.f32.partialorder %v141, 0.0
  %v143 = vsub.f32 0.0, %v87
  %v144 = vsel %vm142, %v143, %v87
  %v145 = vadd.f32 %v144, %v105
  %v146 = vadd.f32 %v145, %v127
  %v147 = vmul.f32 %v146, 0.33333334
  %s148 = scalar_lea.vmem %s1, %s35
  %149 = vst [vmem:[%s148] sm:$0xff] %v147
  %v150 = vsub.f32 0.0, %v86
  %v151 = vsel %vm142, %v150, %v86
  %v152 = vmul.f32 %v89, %v104
  %v153 = vsub.f32 0.0, %v152
  %v154 = vmul.f32 %v110, %v126
  %v155 = vsub.f32 0.0, %v154
  %v156 = vmul.f32 %v89, %v110
  %v157 = vsub.f32 %v156, %v90
  %v158 = vmul.f32 %v157, %v126
  %v159 = vmul.f32 %v24, %v151
  %v160 = vmul.f32 %v24, %v153
  %v161 = vmul.f32 %v26, %v104
  %v162 = vadd.f32 %v160, %v161
  %v163 = vmul.f32 %v24, %v158
  %v164 = vmul.f32 %v26, %v155
  %v165 = vadd.f32 %v163, %v164
  %v166 = vmul.f32 %v28, %v126
  %v167 = vadd.f32 %v165, %v166
  %v168 = vmul.f32 %v31, %v151
  %v169 = vmul.f32 %v31, %v158
  %v170 = vmul.f32 %v34, %v155
  %v171 = vadd.f32 %v169, %v170
  %v172 = vmul.f32 %v37, %v126
  %v173 = vadd.f32 %v171, %v172
  %v174 = vmul.f32 %v40, %v151
  %v175 = vmul.f32 %v40, %v158
  %v176 = vmul.f32 %v43, %v155
  %v177 = vadd.f32 %v175, %v176
  %v178 = vmul.f32 %v46, %v126
  %v179 = vadd.f32 %v177, %v178
  %v180 = vmax.f32 %v167, -1.0
  %v181 = vmin.f32 %v180, 1.0
  %v182 = vmul.f32 %v181, %v181
  %v183 = vsub.f32 1.0, %v182
  %v184 = vmax.f32 %v183, 0.0
  %v185 = vrsqrt.pop %v184
  %v186 = vmul.f32 %v185, %v184
  %v187 = vmul.f32 %v186, %v185
  %v188 = vmul.f32 0.5, %v187
  %v189 = vsub.f32 1.5, %v188
  %v190 = vmul.f32 %v185, %v189
  %v191 = vmul.f32 %v184, %v190
  %vm192 = vcmp.eq.f32.partialorder %v184, inf
  %v193 = vsel %vm192, %v184, %v191
  %vm194 = vcmp.eq.f32.partialorder %v184, 0.0
  %v195 = vand.u32 %v184, 2147483648
  %v196 = vsel %vm194, %v195, %v193
  %v197 = vand.u32 2147483647, %v181
  %v198 = vand.u32 2147483647, %v196
  %v199 = vmul.f32 %v198, 2.4142137
  %vm200 = vcmp.gt.f32.partialorder %v197, %v199
  %v201 = vmul.f32 %v198, 0.41421357
  %vm202 = vcmp.gt.f32.partialorder %v197, %v201
  %v203 = vsub.f32 0.0, %v198
  %v204 = vsub.f32 %v197, %v198
  %v205 = vsel %vm202, %v204, %v197
  %v206 = vsel %vm200, %v203, %v205
  %v207 = vadd.f32 %v197, %v198
  %v208 = vsel %vm202, %v207, %v198
  %v209 = vsel %vm200, %v197, %v208
  %vm210 = vcmp.eq.f32.partialorder %v209, 0.0
  %v211 = vsel %vm210, 1.0, %v209
  %v212 = vrcp.pop %v211
  %v213 = vmul.f32 %v211, %v212
  %v214 = vsub.f32 1.0, %v213
  %v215 = vmul.f32 %v212, %v214
  %v216 = vadd.f32 %v212, %v215
  %vm217 = vweird.f32 %v211
  %vm218 = vweird.f32 %v212
  %vm219 = vmor %vm217, %vm218
  %v220 = vsel %vm219, %v212, %v216
  %v221 = vand.u32 2147483647, %v211
  %vm222 = vcmp.eq.f32.partialorder %v221, 8.507059e+37
  %v223 = vand.u32 %v211, 2147483648
  %v224 = vor.u32 1.1754944e-38, %v223
  %v225 = vsel %vm222, %v224, %v220
  %v226 = vmul.f32 %v206, %v225
  %v227 = vsel %vm202, 0.7853982, 0.0
  %v228 = vsel %vm200, 1.5707964, %v227
  %v229 = vmul.f32 %v226, %v226
  %v230 = vmul.f32 %v229, 0.080537446
  %v231 = vsub.f32 %v230, 0.13877685
  %v232 = vmul.f32 %v231, %v229
  %v233 = vadd.f32 %v232, 0.19977711
  %v234 = vmul.f32 %v233, %v229
  %v235 = vsub.f32 %v234, 0.3333295
  %v236 = vmul.f32 %v235, %v229
  %v237 = vmul.f32 %v236, %v226
  %v238 = vadd.f32 %v237, %v226
  %v239 = vadd.f32 %v228, %v238
  %vm240 = vcmp.ge.f32.partialorder %v196, 0.0
  %v241 = vsub.f32 3.1415927, %v239
  %v242 = vsel %vm240, %v239, %v241
  %vm243 = vcmp.ge.f32.partialorder %v181, 0.0
  %v244 = vsub.f32 0.0, %v242
  %v245 = vsel %vm243, %v242, %v244
  %v246 = vand.u32 2147483647, %v245
  %v247 = vsub.f32 %v246, 1.5707964
  %v248 = vmul.f32 %v247, %v247
  %vm249 = vcmp.lt.f32.partialorder %v248, 1e-09
  %v250 = vsel %vm249, 1.0, %v196
  %v251 = vrcp.pop %v250
  %v252 = vmul.f32 %v173, %v251
  %v253 = vmul.f32 %v179, %v251
  %v254 = vand.u32 2147483647, %v252
  %v255 = vand.u32 2147483647, %v253
  %v256 = vmul.f32 %v255, 2.4142137
  %vm257 = vcmp.gt.f32.partialorder %v254, %v256
  %v258 = vmul.f32 %v255, 0.41421357
  %vm259 = vcmp.gt.f32.partialorder %v254, %v258
  %v260 = vsub.f32 0.0, %v255
  %v261 = vsub.f32 %v254, %v255
  %v262 = vsel %vm259, %v261, %v254
  %v263 = vsel %vm257, %v260, %v262
  %v264 = vadd.f32 %v254, %v255
  %v265 = vsel %vm259, %v264, %v255
  %v266 = vsel %vm257, %v254, %v265
  %vm267 = vcmp.eq.f32.partialorder %v266, 0.0
  %v268 = vsel %vm267, 1.0, %v266
  %v269 = vrcp.pop %v268
  %v270 = vmul.f32 %v268, %v269
  %v271 = vsub.f32 1.0, %v270
  %v272 = vmul.f32 %v269, %v271
  %v273 = vadd.f32 %v269, %v272
  %vm274 = vweird.f32 %v268
  %vm275 = vweird.f32 %v269
  %vm276 = vmor %vm274, %vm275
  %v277 = vsel %vm276, %v269, %v273
  %v278 = vand.u32 2147483647, %v268
  %vm279 = vcmp.eq.f32.partialorder %v278, 8.507059e+37
  %v280 = vand.u32 %v268, 2147483648
  %v281 = vor.u32 1.1754944e-38, %v280
  %v282 = vsel %vm279, %v281, %v277
  %v283 = vmul.f32 %v263, %v282
  %v284 = vsel %vm259, 0.7853982, 0.0
  %v285 = vsel %vm257, 1.5707964, %v284
  %v286 = vmul.f32 %v283, %v283
  %v287 = vmul.f32 %v286, 0.080537446
  %v288 = vsub.f32 %v287, 0.13877685
  %v289 = vmul.f32 %v288, %v286
  %v290 = vadd.f32 %v289, 0.19977711
  %v291 = vmul.f32 %v290, %v286
  %v292 = vsub.f32 %v291, 0.3333295
  %v293 = vmul.f32 %v292, %v286
  %v294 = vmul.f32 %v293, %v283
  %v295 = vadd.f32 %v294, %v283
  %v296 = vadd.f32 %v285, %v295
  %vm297 = vcmp.ge.f32.partialorder %v253, 0.0
  %v298 = vsub.f32 3.1415927, %v296
  %v299 = vsel %vm297, %v296, %v298
  %vm300 = vcmp.ge.f32.partialorder %v252, 0.0
  %v301 = vsub.f32 0.0, %v299
  %v302 = vsel %vm300, %v299, %v301
  %v303 = vmul.f32 %v162, %v251
  %v304 = vmul.f32 %v159, %v251
  %v305 = vand.u32 2147483647, %v303
  %v306 = vand.u32 2147483647, %v304
  %v307 = vmul.f32 %v306, 2.4142137
  %vm308 = vcmp.gt.f32.partialorder %v305, %v307
  %v309 = vmul.f32 %v306, 0.41421357
  %vm310 = vcmp.gt.f32.partialorder %v305, %v309
  %v311 = vsub.f32 0.0, %v306
  %v312 = vsub.f32 %v305, %v306
  %v313 = vsel %vm310, %v312, %v305
  %v314 = vsel %vm308, %v311, %v313
  %v315 = vadd.f32 %v305, %v306
  %v316 = vsel %vm310, %v315, %v306
  %v317 = vsel %vm308, %v305, %v316
  %vm318 = vcmp.eq.f32.partialorder %v317, 0.0
  %v319 = vsel %vm318, 1.0, %v317
  %v320 = vrcp.pop %v319
  %v321 = vmul.f32 %v319, %v320
  %v322 = vsub.f32 1.0, %v321
  %v323 = vmul.f32 %v320, %v322
  %v324 = vadd.f32 %v320, %v323
  %vm325 = vweird.f32 %v319
  %vm326 = vweird.f32 %v320
  %vm327 = vmor %vm325, %vm326
  %v328 = vsel %vm327, %v320, %v324
  %v329 = vand.u32 2147483647, %v319
  %vm330 = vcmp.eq.f32.partialorder %v329, 8.507059e+37
  %v331 = vand.u32 %v319, 2147483648
  %v332 = vor.u32 1.1754944e-38, %v331
  %v333 = vsel %vm330, %v332, %v328
  %v334 = vmul.f32 %v314, %v333
  %v335 = vsel %vm310, 0.7853982, 0.0
  %v336 = vsel %vm308, 1.5707964, %v335
  %v337 = vmul.f32 %v334, %v334
  %v338 = vmul.f32 %v337, 0.080537446
  %v339 = vsub.f32 %v338, 0.13877685
  %v340 = vmul.f32 %v339, %v337
  %v341 = vadd.f32 %v340, 0.19977711
  %v342 = vmul.f32 %v341, %v337
  %v343 = vsub.f32 %v342, 0.3333295
  %v344 = vmul.f32 %v343, %v337
  %v345 = vmul.f32 %v344, %v334
  %v346 = vadd.f32 %v345, %v334
  %v347 = vadd.f32 %v336, %v346
  %vm348 = vcmp.ge.f32.partialorder %v304, 0.0
  %v349 = vsub.f32 3.1415927, %v347
  %v350 = vsel %vm348, %v347, %v349
  %vm351 = vcmp.ge.f32.partialorder %v303, 0.0
  %v352 = vsub.f32 0.0, %v350
  %v353 = vsel %vm351, %v350, %v352
  %v354 = vsel %vm249, 0.0, %v302
  %s355 = scalar_lea.vmem %s1, %s8
  %356 = vst [vmem:[%s355] sm:$0xff] %v354
  %s357 = scalar_lea.vmem %s1, %s29
  %358 = vst [vmem:[%s357] sm:$0xff] %v245
  %s359 = scalar_lea.vmem %s1, %s32
  %360 = vst [vmem:[%s359] sm:$0xff] %v353
  %v361 = vsel %vm249, 1, 0
  %v362 = vcvt.s32.f32 %v361
  %363 = vmax.xlane.f32.xlu0 %v362
  %v364 = vpop.xlane.xlu0 %363
  %v365 = vrot.slane %v364, 4
  %v366 = vmax.f32 %v364, %v365
  %v367 = vrot.slane %v366, 2
  %v368 = vmax.f32 %v366, %v367
  %v369 = vrot.slane %v368, 1
  %v370 = vmax.f32 %v368, %v369
  %s371 = vtos %v370
  %p372 = scmp.gt.f32.partialorder %s371, 0.0
  // Predicated region
  $region6: #{affine_classic_inverse.1} parent=0 // pred_check
    %p373 = pneg %p372
  $region7: #{affine_classic_inverse.1} parent=0 // pred_check_branch
    %375 = sbr.rel (%p373) target = $region9
  $region8: #{affine_classic_inverse.1} parent=0 // pred_region
    %v376 = vand.u32 2147483647, %v167
    %vm377 = vcmp.lt.f32.partialorder %v376, 1e-12
    %v378 = vsel %vm377, 1.0, %v167
    %v379 = vsub.f32 0.0, %v168
    %v380 = vsub.f32 0.0, %v174
    %v381 = vrcp.pop %v378
    %v382 = vmul.f32 %v378, %v381
    %v383 = vsub.f32 1.0, %v382
    %v384 = vmul.f32 %v381, %v383
    %v385 = vadd.f32 %v381, %v384
    %vm386 = vweird.f32 %v378
    %vm387 = vweird.f32 %v381
    %vm388 = vmor %vm386, %vm387
    %v389 = vsel %vm388, %v381, %v385
    %v390 = vand.u32 2147483647, %v378
    %vm391 = vcmp.eq.f32.partialorder %v390, 8.507059e+37
    %v392 = vand.u32 %v378, 2147483648
    %v393 = vor.u32 1.1754944e-38, %v392
    %v394 = vsel %vm391, %v393, %v389
    %v395 = vmul.f32 %v380, %v394
    %v396 = vand.u32 2147483647, %v379
    %v397 = vand.u32 2147483647, %v395
    %v398 = vmul.f32 %v397, 2.4142137
    %vm399 = vcmp.gt.f32.partialorder %v396, %v398
    %v400 = vmul.f32 %v397, 0.41421357
    %vm401 = vcmp.gt.f32.partialorder %v396, %v400
    %v402 = vsub.f32 0.0, %v397
    %v403 = vsub.f32 %v396, %v397
    %v404 = vsel %vm401, %v403, %v396
    %v405 = vsel %vm399, %v402, %v404
    %v406 = vadd.f32 %v396, %v397
    %v407 = vsel %vm401, %v406, %v397
    %v408 = vsel %vm399, %v396, %v407
    %vm409 = vcmp.eq.f32.partialorder %v408, 0.0
    %v410 = vsel %vm409, 1.0, %v408
    %v411 = vrcp.pop %v410
    %v412 = vmul.f32 %v410, %v411
    %v413 = vsub.f32 1.0, %v412
    %v414 = vmul.f32 %v411, %v413
    %v415 = vadd.f32 %v411, %v414
    %vm416 = vweird.f32 %v410
    %vm417 = vweird.f32 %v411
    %vm418 = vmor %vm416, %vm417
    %v419 = vsel %vm418, %v411, %v415
    %v420 = vand.u32 2147483647, %v410
    %vm421 = vcmp.eq.f32.partialorder %v420, 8.507059e+37
    %v422 = vand.u32 %v410, 2147483648
    %v423 = vor.u32 1.1754944e-38, %v422
    %v424 = vsel %vm421, %v423, %v419
    %v425 = vmul.f32 %v405, %v424
    %v426 = vsel %vm401, 0.7853982, 0.0
    %v427 = vsel %vm399, 1.5707964, %v426
    %v428 = vmul.f32 %v425, %v425
    %v429 = vmul.f32 %v428, 0.080537446
    %v430 = vsub.f32 %v429, 0.13877685
    %v431 = vmul.f32 %v430, %v428
    %v432 = vadd.f32 %v431, 0.19977711
    %v433 = vmul.f32 %v432, %v428
    %v434 = vsub.f32 %v433, 0.3333295
    %v435 = vmul.f32 %v434, %v428
    %v436 = vmul.f32 %v435, %v425
    %v437 = vadd.f32 %v436, %v425
    %v438 = vadd.f32 %v427, %v437
    %vm439 = vcmp.ge.f32.partialorder %v395, 0.0
    %v440 = vsub.f32 3.1415927, %v438
    %v441 = vsel %vm439, %v438, %v440
    %vm442 = vcmp.ge.f32.partialorder %v379, 0.0
    %v443 = vsub.f32 0.0, %v441
    %v444 = vsel %vm442, %v441, %v443
    %v445 = vsel %vm249, %v444, %v353
    %446 = vst [vmem:[%s359] sm:$0xff] %v445
  $region9: #{affine_classic_inverse.1} parent=0 // pred_fallthru
    _
  // Predicated region
  $region10: #{affine_classic_inverse.1} parent=0 // pred_check
    _
  $region11: #{affine_classic_inverse.1} parent=0 // pred_check_branch
    %448 = sbr.rel (0) target = $region13
  $region12: #{affine_classic_inverse.1} parent=0 // pred_region
    _
  $region13: #{affine_classic_inverse.1} parent=0 // pred_fallthru
    _
  // Predicated region
  $region14: #{affine_classic_inverse.1} parent=0 // pred_check
    _
  $region15: #{affine_classic_inverse.1} parent=0 // pred_check_branch
    %450 = sbr.rel (0) target = $region17
  $region16: #{affine_classic_inverse.1} parent=0 // pred_region
    _
  $region17: #{affine_classic_inverse.1} parent=0 // pred_fallthru
    _

</llo_original>
